<compile_context>
chip_gen: v7x
topology: tpu7x:2x2x1
jax: 0.10.0
libtpu: 0.0.40
codegen_flags: <defaults>
</compile_context>

<pallas_src>
import functools

import jax
import jax.numpy as jnp
from jax.experimental import pallas as pl
from jax.experimental.pallas import tpu as pltpu


def _round_up(x, m):
    return (x + m - 1) // m * m


def _ce_kernel(logits_ref, labels_ref, out_ref, *, hw, tile_hw, t2, mask_from):
    """One (batch-row, core-half, column-tile) step of softmax cross-entropy.

    logits_ref: (1, C, T) float     labels_ref: (1, 1, T) int32
    out_ref:    (1, 1, 1, T) f32    per-(batch-row, core) lane-wise partial
                                    sums, resident across the column-tile axis
    """
    c = pl.program_id(1)
    t = pl.program_id(2)

    @pl.when(t == 0)
    def _():
        out_ref[...] = jnp.zeros_like(out_ref)

    x = logits_ref[0]                         # (C, T) native dtype (f32/bf16)
    lab = labels_ref[0]                       # (1, T) int32

    # Numerically-stable logsumexp over the class (sublane) axis.  The max and
    # the one-hot pick stay in the input dtype; only exp/log are in f32.
    m = jnp.max(x, axis=0, keepdims=True)                         # (1, T)
    z = (x - m).astype(jnp.float32)                                # (C, T) f32
    lse = m.astype(jnp.float32) + jnp.log(
        jnp.sum(jnp.exp(z), axis=0, keepdims=True))                # (1, T) f32

    # Gather the logit at the label index via a one-hot select (per lane).
    cls_ids = jax.lax.broadcasted_iota(jnp.int32, x.shape, 0)      # (C, T)
    picked = jnp.sum(jnp.where(cls_ids == lab, x, jnp.zeros((), x.dtype)),
                     axis=0, keepdims=True).astype(jnp.float32)    # (1, T)

    # ignore_index semantics: negative labels contribute 0 loss (divisor is
    # still the full N*H*W, matching reduction='none' followed by .mean()).
    loss = jnp.where(lab >= 0, lse - picked, jnp.float32(0.0))     # (1, T)

    if mask_from is None:
        # Fast path: every lane of every tile is in-bounds.
        out_ref[0, 0] = out_ref[0, 0] + loss
    else:
        g = c * t2 + t                         # global column-tile index

        @pl.when(g < mask_from)
        def _():
            out_ref[0, 0] = out_ref[0, 0] + loss

        @pl.when(g >= mask_from)
        def _():
            pos = g * tile_hw + jax.lax.broadcasted_iota(
                jnp.int32, loss.shape, 1)
            out_ref[0, 0] = out_ref[0, 0] + jnp.where(
                pos < hw, loss, jnp.float32(0.0))


def cross_entropy_loss(cls_score, label, *, loss_weight=1.0, tile_hw=None):
    """cls_score: (N, C, H, W) float; label: (N, H, W) int.  Returns scalar f32."""
    N, C, H, W = cls_score.shape
    HW = H * W
    M = N * HW

    # Native-layout views only: contiguous reshapes, no transpose / HBM pass.
    logits = cls_score.reshape(N, C, HW)
    if label.dtype == jnp.int32:
        labels = label.reshape(N, 1, HW)
    else:
        # TODO(synk): pass non-int32 labels through and cast per-tile in-kernel
        # to avoid this extra HBM pass; int32 callers pay nothing.
        labels = label.reshape(N, 1, HW).astype(jnp.int32)

    itemsize = jnp.dtype(cls_score.dtype).itemsize
    sublane = max(1, 32 // itemsize)          # 8 (f32) / 16 (bf16) / 32 (int8)
    padded_c = _round_up(C, sublane)          # truthful VMEM sublane padding

    if tile_hw is None:
        # ~3 MiB per (padded) logits block: rows per class stay >= 2 KiB for
        # large C (strided-DMA efficiency) and per-step overhead is amortized.
        target_block_bytes = 3 << 20
        tile_hw = (target_block_bytes // (padded_c * itemsize)) // 128 * 128
        tile_hw = max(512, tile_hw)
    # Cap so a double-buffered logits block stays comfortably inside VMEM.
    max_block_bytes = 20 << 20
    tile_cap = max(128, (max_block_bytes // (padded_c * itemsize)) // 128 * 128)
    tile_hw = min(int(tile_hw), tile_cap, _round_up(HW, 128))
    tile_hw = max(128, _round_up(tile_hw, 128))

    num_tiles = pl.cdiv(HW, tile_hw)

    # 2-way split of the column axis so both v7x TensorCores have work even
    # for N == 1.  Rebalance to an even tile count when possible so single-TC
    # chips do not run a wasted (fully masked) step.
    split = 2 if num_tiles >= 2 else 1
    if split == 2 and num_tiles % 2 == 1:
        cand = max(128, _round_up(pl.cdiv(HW, num_tiles + 1), 128))
        if pl.cdiv(HW, cand) % 2 == 0:
            tile_hw = cand
            num_tiles = pl.cdiv(HW, cand)
    t2 = pl.cdiv(num_tiles, split)
    steps = split * t2

    ragged = (HW % tile_hw) != 0
    if ragged:
        mask_from = num_tiles - 1             # last real tile needs lane mask
    elif steps > num_tiles:
        mask_from = num_tiles                 # only overflow step(s) masked
    else:
        mask_from = None                      # no masking anywhere
    need_clamp = steps > num_tiles

    def _col(c, t):
        g = c * t2 + t
        return jnp.minimum(g, num_tiles - 1) if need_clamp else g

    kernel = functools.partial(_ce_kernel, hw=HW, tile_hw=tile_hw, t2=t2,
                               mask_from=mask_from)

    partial = pl.pallas_call(
        kernel,
        out_shape=jax.ShapeDtypeStruct((N, split, 1, tile_hw), jnp.float32),
        grid_spec=pltpu.PrefetchScalarGridSpec(
            num_scalar_prefetch=0,
            grid=(N, split, t2),
            in_specs=[
                pl.BlockSpec((1, C, tile_hw), lambda i, c, t: (i, 0, _col(c, t))),
                pl.BlockSpec((1, 1, tile_hw), lambda i, c, t: (i, 0, _col(c, t))),
            ],
            out_specs=pl.BlockSpec((1, 1, 1, tile_hw),
                                   lambda i, c, t: (i, c, 0, 0)),
        ),
        compiler_params=pltpu.CompilerParams(
            # batch rows and core-halves each own a private accumulator block
            # -> safe to shard across v7x's two TensorCores; the column-tile
            # axis carries the resident accumulator -> arbitrary.
            dimension_semantics=("parallel", "parallel", "arbitrary"),
            vmem_limit_bytes=48 * 1024 * 1024,
        ),
    )(logits, labels)

    # Tiny finishing reduction (N * split * tile_hw f32) + mean + loss_weight.
    return partial.sum() * jnp.float32(float(loss_weight) / float(M))


def _reference(cls_score, label):
    logp = jax.nn.log_softmax(
        jnp.transpose(cls_score.astype(jnp.float32), (0, 2, 3, 1)), axis=-1)
    picked = jnp.take_along_axis(logp, label[..., None], axis=-1)[..., 0]
    picked = jnp.where(label >= 0, picked, 0.0)
    return -jnp.mean(picked)


if __name__ == "__main__":
    key = jax.random.PRNGKey(0)
    k1, k2, k3, k4 = jax.random.split(key, 4)

    # Test 1: small canonical shapes, f32, single-tile path.
    N, C, H, W = 2, 4, 16, 16
    cls_score = jax.random.normal(k1, (N, C, H, W), dtype=jnp.float32)
    label = jax.random.randint(k2, (N, H, W), 0, C, dtype=jnp.int32)
    loss = cross_entropy_loss(cls_score, label, loss_weight=1.0)
    jax.block_until_ready(loss)
    ref = _reference(cls_score, label)
    assert jnp.allclose(loss, ref, rtol=1e-5, atol=1e-5), (loss, ref)

    # Test 2: ragged HW, odd tile count, 2-way core split + clamp path, f32.
    N2, C2, H2, W2 = 1, 3, 20, 19
    cls2 = jax.random.normal(k3, (N2, C2, H2, W2), dtype=jnp.float32)
    lab2 = jax.random.randint(k4, (N2, H2, W2), 0, C2, dtype=jnp.int32)
    loss2 = cross_entropy_loss(cls2, lab2, loss_weight=1.0, tile_hw=128)
    jax.block_until_ready(loss2)
    ref2 = _reference(cls2, lab2)
    assert jnp.allclose(loss2, ref2, rtol=1e-5, atol=1e-5), (loss2, ref2)

    # Test 3: bf16 logits (native-dtype max / one-hot pick path).
    cls3 = cls_score.astype(jnp.bfloat16)
    loss3 = cross_entropy_loss(cls3, label, loss_weight=1.0)
    jax.block_until_ready(loss3)
    ref3 = _reference(cls3, label)
    assert jnp.allclose(loss3, ref3, rtol=2e-2, atol=2e-2), (loss3, ref3)

    print("KERNEL_OK")
</pallas_src>

<mosaic_0001>
module attributes {stable_mosaic.version = 11 : i64} {
  func.func @_ce_kernel(%arg0: i32, %arg1: i32, %arg2: i32, %arg3: memref<1x4x256xf32, #tpu.memory_space<vmem>>, %arg4: memref<1x1x256xi32, #tpu.memory_space<vmem>>, %arg5: memref<1x1x1x256xf32, #tpu.memory_space<vmem>>) attributes {dimension_semantics = [#tpu.dimension_semantics<parallel>, #tpu.dimension_semantics<parallel>, #tpu.dimension_semantics<arbitrary>], iteration_bounds = array<i64: 2, 1, 1>, scalar_prefetch = 0 : i64, scratch_operands = 0 : i64, tpu.core_type = #tpu.core_type<tc>, window_params = [{transform_indices = @transform_0, window_bounds = array<i64: 1, 4, 256>}, {transform_indices = @transform_1, window_bounds = array<i64: 1, 1, 256>}, {transform_indices = @transform_2, window_bounds = array<i64: 1, 1, 1, 256>}]} {
    %c0_i32 = arith.constant 0 : i32
    %0 = arith.cmpi eq, %arg2, %c0_i32 : i32
    %1 = arith.extui %0 : i1 to i32
    %c0_i32_0 = arith.constant 0 : i32
    %2 = arith.cmpi ne, %1, %c0_i32_0 : i32
    scf.if %2 {
      %cst_19 = arith.constant 0.000000e+00 : f32
      %34 = vector.broadcast %cst_19 : f32 to vector<1x1x1x256xf32>
      %c0_20 = arith.constant 0 : index
      %c0_21 = arith.constant 0 : index
      %c0_22 = arith.constant 0 : index
      %c0_23 = arith.constant 0 : index
      %35 = vector.load %arg5[%c0_20, %c0_21, %c0_22, %c0_23] : memref<1x1x1x256xf32, #tpu.memory_space<vmem>>, vector<1x1x1x256xf32>
      tpu.vector_store %arg5[%c0_20, %c0_21, %c0_22, %c0_23], %34 {strides = array<i32>} : memref<1x1x1x256xf32, #tpu.memory_space<vmem>>, vector<1x1x1x256xf32>,
    } else {
    }
    %c0 = arith.constant 0 : index
    %c0_1 = arith.constant 0 : index
    %c0_2 = arith.constant 0 : index
    %3 = vector.load %arg3[%c0, %c0_1, %c0_2] : memref<1x4x256xf32, #tpu.memory_space<vmem>>, vector<1x4x256xf32>
    %4 = vector.shape_cast %3 : vector<1x4x256xf32> to vector<4x256xf32>
    %c0_3 = arith.constant 0 : index
    %c0_4 = arith.constant 0 : index
    %c0_5 = arith.constant 0 : index
    %5 = vector.load %arg4[%c0_3, %c0_4, %c0_5] : memref<1x1x256xi32, #tpu.memory_space<vmem>>, vector<1x1x256xi32>
    %6 = vector.shape_cast %5 : vector<1x1x256xi32> to vector<1x256xi32>
    %cst = arith.constant dense<0xFF800000> : vector<256xf32>
    %7 = vector.multi_reduction <maximumf>, %4, %cst [0] : vector<4x256xf32> to vector<256xf32>
    %8 = vector.shape_cast %7 : vector<256xf32> to vector<1x256xf32>
    %9 = vector.broadcast %8 : vector<1x256xf32> to vector<4x256xf32>
    %10 = arith.subf %4, %9 : vector<4x256xf32>
    %11 = math.exp %10 : vector<4x256xf32>
    %cst_6 = arith.constant dense<0.000000e+00> : vector<256xf32>
    %12 = vector.multi_reduction <add>, %11, %cst_6 [0] : vector<4x256xf32> to vector<256xf32>
    %13 = vector.shape_cast %12 : vector<256xf32> to vector<1x256xf32>
    %14 = math.log %13 : vector<1x256xf32>
    %15 = arith.addf %8, %14 : vector<1x256xf32>
    %16 = tpu.iota {dimensions = array<i32: 0>} : vector<4x256xi32>
    %17 = vector.broadcast %6 : vector<1x256xi32> to vector<4x256xi32>
    %18 = arith.cmpi eq, %16, %17 : vector<4x256xi32>
    %cst_7 = arith.constant 0.000000e+00 : f32
    %19 = vector.broadcast %cst_7 : f32 to vector<4x256xf32>
    %20 = arith.select %18, %4, %19 : vector<4x256xi1>, vector<4x256xf32>
    %cst_8 = arith.constant dense<0.000000e+00> : vector<256xf32>
    %21 = vector.multi_reduction <add>, %20, %cst_8 [0] : vector<4x256xf32> to vector<256xf32>
    %22 = vector.shape_cast %21 : vector<256xf32> to vector<1x256xf32>
    %c0_i32_9 = arith.constant 0 : i32
    %23 = vector.broadcast %c0_i32_9 : i32 to vector<1x256xi32>
    %24 = arith.cmpi sge, %6, %23 : vector<1x256xi32>
    %25 = arith.subf %15, %22 : vector<1x256xf32>
    %cst_10 = arith.constant 0.000000e+00 : f32
    %26 = vector.broadcast %cst_10 : f32 to vector<1x256xf32>
    %27 = arith.select %24, %25, %26 : vector<1x256xi1>, vector<1x256xf32>
    %c0_11 = arith.constant 0 : index
    %c0_12 = arith.constant 0 : index
    %c0_13 = arith.constant 0 : index
    %c0_14 = arith.constant 0 : index
    %28 = vector.load %arg5[%c0_11, %c0_12, %c0_13, %c0_14] : memref<1x1x1x256xf32, #tpu.memory_space<vmem>>, vector<1x1x1x256xf32>
    %29 = vector.shape_cast %28 : vector<1x1x1x256xf32> to vector<1x256xf32>
    %30 = arith.addf %29, %27 : vector<1x256xf32>
    %c0_15 = arith.constant 0 : index
    %c0_16 = arith.constant 0 : index
    %c0_17 = arith.constant 0 : index
    %c0_18 = arith.constant 0 : index
    %31 = vector.load %arg5[%c0_15, %c0_16, %c0_17, %c0_18] : memref<1x1x1x256xf32, #tpu.memory_space<vmem>>, vector<1x1x1x256xf32>
    %32 = vector.shape_cast %31 : vector<1x1x1x256xf32> to vector<1x256xf32>
    %33 = vector.shape_cast %30 : vector<1x256xf32> to vector<1x1x1x256xf32>
    tpu.vector_store %arg5[%c0_15, %c0_16, %c0_17, %c0_18], %33 {strides = array<i32>} : memref<1x1x1x256xf32, #tpu.memory_space<vmem>>, vector<1x1x1x256xf32>,
    return
  }
  func.func @transform_0(%arg0: i32, %arg1: i32, %arg2: i32) -> (i32, i32, i32) {
    %c1_i32 = arith.constant 1 : i32
    %0 = arith.muli %arg1, %c1_i32 : i32
    %1 = arith.addi %0, %arg2 : i32
    %c0_i32 = arith.constant 0 : i32
    %c0_i32_0 = arith.constant 0 : i32
    return %arg0, %c0_i32, %1 : i32, i32, i32
  }
  func.func @transform_1(%arg0: i32, %arg1: i32, %arg2: i32) -> (i32, i32, i32) {
    %c1_i32 = arith.constant 1 : i32
    %0 = arith.muli %arg1, %c1_i32 : i32
    %1 = arith.addi %0, %arg2 : i32
    %c0_i32 = arith.constant 0 : i32
    %c0_i32_0 = arith.constant 0 : i32
    return %arg0, %c0_i32, %1 : i32, i32, i32
  }
  func.func @transform_2(%arg0: i32, %arg1: i32, %arg2: i32) -> (i32, i32, i32, i32) {
    %c0_i32 = arith.constant 0 : i32
    %c0_i32_0 = arith.constant 0 : i32
    %c0_i32_1 = arith.constant 0 : i32
    return %arg0, %arg1, %c0_i32, %c0_i32_0 : i32, i32, i32, i32
  }
}

</mosaic_0001>

<llo_original>
// kernel: tpu_custom_call.1
$region0: #{tpu_custom_call.1}
  #allocation0 [shape = 'u32[]', space=smem, size = 0x4, offset = 0x4, fixed_abs, tag = 'smem constant byte address 0x4 - core index']
  #allocation1 [shape = 'u32[144,128]{1,0:T(1,128)}', space=vmem, size = 0x12000, scoped, tag = 'internal scratch']
  %s0 = inlined_call_operand.hbm [shape: f32[2,4,256], index: 0, kind: input, shape index: {}]
  %s1 = inlined_call_operand.hbm [shape: s32[2,1,256], index: 1, kind: input, shape index: {}]
  %s2 = inlined_call_operand.hbm [shape: f32[2,1,1,256], index: 2, kind: output, shape index: {}]
  %s3 = sld [smem:[#allocation0]]
  $region53: #{tpu_custom_call.1} parent=0
    _
  %s5 = ssub.s32 1, %s3
  %s6 = scalar_select 0, %s5, %s3
  $region1: #{tpu_custom_call.1} parent=0
    #allocation2 [shape = 'u8[8192]{0}', space=vmem, size = 0x2000, scoped, tag = 'input window, operand 0']
    #allocation3 [shape = 's32[2]{0}', space=sflag, size = 0x8, scoped, tag = 'scoped memory for tpu_custom_call.1']
    #allocation4 [shape = 's32[2]{0}', space=sflag, size = 0x8, scoped, tag = 'scoped memory for tpu_custom_call.1']
    #allocation5 [shape = 'u8[2048]{0}', space=vmem, size = 0x800, scoped, tag = 'input window, operand 1']
    #allocation6 [shape = 's32[2]{0}', space=sflag, size = 0x8, scoped, tag = 'scoped memory for tpu_custom_call.1']
    #allocation7 [shape = 'u8[2048]{0}', space=vmem, size = 0x800, scoped, tag = 'output window, operand 0']
    %7 = vsyncpa [#allocation3], 0
    %s8 = scalar_lea.sflag [#allocation3], 1
    %9 = vsyncpa %s8, 0
    %10 = vsyncpa [#allocation6], 0
    %s11 = scalar_lea.sflag [#allocation6], 1
    %12 = vsyncpa %s11, 0
    %13 = vsyncpa [#allocation4], 0
    %s14 = scalar_lea.sflag [#allocation4], 1
    %15 = vsyncpa %s14, 0
    loop: start=0, step=1, limit=4
    $region2: #{tpu_custom_call.1} parent=1 // loop_pre_header
      _
    $region3: #{tpu_custom_call.1} parent=1 // loop_header
      %s17 = sphi 0, %s21
      %p18 = scmp.ge.s32.totalorder %s17, 4
      %s24 = sphi 0, %s43
      %s25 = sphi 0, %s39
      %s26 = sphi 0, %s35
      %s27 = sphi 0, %s24
      %s28 = sphi 0, %s25
      %s29 = sphi 0, %s26
      %s30 = sphi 0, %s27
      %s31 = sphi 0, %s28
      %s32 = sphi 0, %s29
      %s50 = sphi 0, %s52
      %s53 = sphi 0, %s50
      %s54 = sphi 0, %s53
      %s70 = sphi 0, %s54
      %s80 = sphi 0, %s82
      %s83 = sphi 0, %s80
      %s84 = sphi 0, %s83
      %s100 = sphi 0, %s84
      %s108 = sphi 0, %s110
      %s111 = sphi 0, %s108
      %s112 = sphi 0, %s111
      %s128 = sphi 0, %s112
    $region4: #{tpu_custom_call.1} parent=1 // loop_header_branch
      %20 = sbr.rel (%p18) target = $region8
    $region5: #{tpu_custom_call.1} parent=1 // loop_body
      %s22 = ssub.s32 %s17, 1
      %s23 = ssub.s32 %s17, 2
      %s33 = sadd.s32 1, %s26
      %p34 = scmp.ge.s32.totalorder %s33, 1
      %s35 = scalar_select %p34, 0, %s33
      %s36 = sadd.s32 1, %s25
      %s37 = scalar_select %p34, %s36, %s25
      %p38 = scmp.ge.s32.totalorder %s37, 1
      %s39 = scalar_select %p38, 0, %s37
      %s40 = sadd.s32 1, %s24
      %s41 = scalar_select %p38, %s40, %s24
      %p42 = scmp.ge.s32.totalorder %s41, 2
      %s43 = scalar_select %p42, 0, %s41
      %s44 = sadd.s32 %s25, %s26
      %s45 = sadd.s32 %s39, %s35
      %s46 = ssub.s32 %s24, %s43
      %s47 = ssub.s32 %s44, %s45
      %s48 = sor.u32 %s46, %s47
      %p49 = scmp.eq.s32.totalorder %s48, 0
      %s51 = sadd.s32 %s50, 1
      %s52 = scalar_select %p49, %s50, %s51
      %p55 = pneg %p49
      %p56 = scmp.eq.s32.totalorder %s17, 1
      %p57 = por %p55, %p56
      %p58 = scmp.ne.s32.totalorder %s50, %s53
      %p59 = scmp.eq.s32.totalorder %s17, 0
      %p60 = por %p58, %p59
      %p61 = scmp.ne.s32.totalorder %s50, %s53
      %p62 = scmp.eq.s32.totalorder %s22, 1
      %p63 = por %p61, %p62
      %p64 = scmp.ne.s32.totalorder %s53, %s54
      %p65 = scmp.eq.s32.totalorder %s22, 0
      %p66 = por %p64, %p65
      %p67 = scmp.ne.s32.totalorder %s53, %s54
      %p68 = scmp.eq.s32.totalorder %s23, 1
      %p69 = por %p67, %p68
      %p71 = scmp.ne.s32.totalorder %s54, %s70
      %p72 = scmp.eq.s32.totalorder %s23, 0
      %p73 = por %p71, %p72
      %s74 = sadd.s32 %s25, %s26
      %s75 = sadd.s32 %s39, %s35
      %s76 = ssub.s32 %s24, %s43
      %s77 = ssub.s32 %s74, %s75
      %s78 = sor.u32 %s76, %s77
      %p79 = scmp.eq.s32.totalorder %s78, 0
      %s81 = sadd.s32 %s80, 1
      %s82 = scalar_select %p79, %s80, %s81
      %p85 = pneg %p79
      %p86 = scmp.eq.s32.totalorder %s17, 1
      %p87 = por %p85, %p86
      %p88 = scmp.ne.s32.totalorder %s80, %s83
      %p89 = scmp.eq.s32.totalorder %s17, 0
      %p90 = por %p88, %p89
      %p91 = scmp.ne.s32.totalorder %s80, %s83
      %p92 = scmp.eq.s32.totalorder %s22, 1
      %p93 = por %p91, %p92
      %p94 = scmp.ne.s32.totalorder %s83, %s84
      %p95 = scmp.eq.s32.totalorder %s22, 0
      %p96 = por %p94, %p95
      %p97 = scmp.ne.s32.totalorder %s83, %s84
      %p98 = scmp.eq.s32.totalorder %s23, 1
      %p99 = por %p97, %p98
      %p101 = scmp.ne.s32.totalorder %s84, %s100
      %p102 = scmp.eq.s32.totalorder %s23, 0
      %p103 = por %p101, %p102
      %s104 = ssub.s32 %s24, %s43
      %s105 = ssub.s32 %s25, %s39
      %s106 = sor.u32 %s104, %s105
      %p107 = scmp.eq.s32.totalorder %s106, 0
      %s109 = sadd.s32 %s108, 1
      %s110 = scalar_select %p107, %s108, %s109
      %p113 = pneg %p107
      %p114 = scmp.eq.s32.totalorder %s17, 1
      %p115 = por %p113, %p114
      %p116 = scmp.ne.s32.totalorder %s108, %s111
      %p117 = scmp.eq.s32.totalorder %s17, 0
      %p118 = por %p116, %p117
      %p119 = scmp.ne.s32.totalorder %s108, %s111
      %p120 = scmp.eq.s32.totalorder %s22, 1
      %p121 = por %p119, %p120
      %p122 = scmp.ne.s32.totalorder %s111, %s112
      %p123 = scmp.eq.s32.totalorder %s22, 0
      %p124 = por %p122, %p123
      %p125 = scmp.ne.s32.totalorder %s111, %s112
      %p126 = scmp.eq.s32.totalorder %s23, 1
      %p127 = por %p125, %p126
      %p129 = scmp.ne.s32.totalorder %s112, %s128
      %p130 = scmp.eq.s32.totalorder %s23, 0
      %p131 = por %p129, %p130
      %p132 = scmp.le.s32.totalorder 1, %s17
      %p133 = scmp.lt.s32.totalorder %s17, 3
      %p134 = pnand %p132, %p133
      %p135 = pneg %p134
      // Predicated region
      $region9: #{tpu_custom_call.1} parent=5 // pred_check
        _
      $region10: #{tpu_custom_call.1} parent=5 // pred_check_branch
        %137 = sbr.rel (%p134) target = $region12
      $region11: #{tpu_custom_call.1} parent=5 // pred_region
        %s138 = ssub.s32 %s17, 1
      $region12: #{tpu_custom_call.1} parent=5 // pred_fallthru
        _
      %p139 = scmp.lt.s32.totalorder %s17, 2
      // Predicated region
      $region13: #{tpu_custom_call.1} parent=5 // pred_check
        %p140 = pneg %p139
      $region14: #{tpu_custom_call.1} parent=5 // pred_check_branch
        %142 = sbr.rel (%p140) target = $region16
      $region15: #{tpu_custom_call.1} parent=5 // pred_region
        // Predicated region
        $region17: #{tpu_custom_call.1} parent=15 // pred_check
          %p143 = pneg %p60
        $region18: #{tpu_custom_call.1} parent=15 // pred_check_branch
          %145 = sbr.rel (%p143) target = $region20
        $region19: #{tpu_custom_call.1} parent=15 // pred_region
          %s146 = sand.u32 %s50, 1
          %s147 = scalar_lea.sflag [#allocation3], %s146
          %s148 = sand.u32 %s50, 1
          %s149 = smul.addr %s148, 8
          %s150 = scalar_lea.vmem [#allocation2], %s149
          %s151 = sadd.s32 %s25, %s26
          %s152 = smul.u32 2, %s151
          %s154 = ssub.s32 128, 128
          %155 = vsyncadd %s147, %s154
          %s156 = smul.addr %s24, 2
          %s157 = sadd.s32 %s152, %s156
          %s158 = smul.addr %s157, 64
          %s159 = scalar_lea.hbm %s0, %s158
          %s161 = sshll.u32 %s150, 4
          %s162 = int_to_ptr.vmem [resolvable:$true] %s161
          %164 = dma.hbm_to_vmem [thread:$0]  %s159, 128, %s162, %s147
        $region20: #{tpu_custom_call.1} parent=15 // pred_fallthru
          _
        // Predicated region
        $region21: #{tpu_custom_call.1} parent=15 // pred_check
          %p165 = pneg %p90
        $region22: #{tpu_custom_call.1} parent=15 // pred_check_branch
          %167 = sbr.rel (%p165) target = $region24
        $region23: #{tpu_custom_call.1} parent=15 // pred_region
          %s168 = sand.u32 %s80, 1
          %s169 = scalar_lea.sflag [#allocation6], %s168
          %s170 = sand.u32 %s80, 1
          %s171 = smul.addr %s170, 2
          %s172 = scalar_lea.vmem [#allocation5], %s171
          %s173 = sadd.s32 %s25, %s26
          %s174 = smul.u32 2, %s173
          %s176 = ssub.s32 32, 32
          %177 = vsyncadd %s169, %s176
          %s178 = smul.addr %s24, 2
          %s179 = sadd.s32 %s174, %s178
          %s180 = smul.addr %s179, 16
          %s181 = scalar_lea.hbm %s1, %s180
          %s183 = sshll.u32 %s172, 4
          %s184 = int_to_ptr.vmem [resolvable:$true] %s183
          %186 = dma.hbm_to_vmem [thread:$0]  %s181, 32, %s184, %s169
        $region24: #{tpu_custom_call.1} parent=15 // pred_fallthru
          _
      $region16: #{tpu_custom_call.1} parent=5 // pred_fallthru
        _
      %p187 = scmp.le.s32.totalorder 1, %s17
      %p188 = scmp.lt.s32.totalorder %s17, 3
      %p189 = pnand %p187, %p188
      %p190 = pneg %p189
      // Predicated region
      $region25: #{tpu_custom_call.1} parent=5 // pred_check
        _
      $region26: #{tpu_custom_call.1} parent=5 // pred_check_branch
        %192 = sbr.rel (%p189) target = $region28
      $region27: #{tpu_custom_call.1} parent=5 // pred_region
        %s193 = ssub.s32 %s17, 1
        %s194 = sand.u32 %s53, 1
        %s195 = scalar_lea.sflag [#allocation3], %s194
        %s196 = sand.u32 %s53, 1
        %s197 = smul.addr %s196, 8
        %s198 = scalar_lea.vmem [#allocation2], %s197
        // Predicated region
        $region29: #{tpu_custom_call.1} parent=27 // pred_check
          %p199 = pneg %p66
        $region30: #{tpu_custom_call.1} parent=27 // pred_check_branch
          %201 = sbr.rel (%p199) target = $region32
        $region31: #{tpu_custom_call.1} parent=27 // pred_region
          %202 = dma.done %s195, 128
        $region32: #{tpu_custom_call.1} parent=27 // pred_fallthru
          _
        %s203 = sand.u32 %s83, 1
        %s204 = scalar_lea.sflag [#allocation6], %s203
        %s205 = sand.u32 %s83, 1
        %s206 = smul.addr %s205, 2
        %s207 = scalar_lea.vmem [#allocation5], %s206
        // Predicated region
        $region33: #{tpu_custom_call.1} parent=27 // pred_check
          %p208 = pneg %p96
        $region34: #{tpu_custom_call.1} parent=27 // pred_check_branch
          %210 = sbr.rel (%p208) target = $region36
        $region35: #{tpu_custom_call.1} parent=27 // pred_region
          %211 = dma.done %s204, 32
        $region36: #{tpu_custom_call.1} parent=27 // pred_fallthru
          _
        %s212 = sand.u32 %s53, 1
        %s213 = scalar_lea.sflag [#allocation3], %s212
        %s214 = sand.u32 %s53, 1
        %s215 = smul.addr %s214, 8
        %s216 = scalar_lea.vmem [#allocation2], %s215
        %p217 = pneg %p66
        %p218 = pneg %p63
        %s219 = sand.u32 %s83, 1
        %s220 = scalar_lea.sflag [#allocation6], %s219
        %s221 = sand.u32 %s83, 1
        %s222 = smul.addr %s221, 2
        %s223 = scalar_lea.vmem [#allocation5], %s222
        %p224 = pneg %p96
        %p225 = pneg %p93
        %p226 = pneg %p124
        %p227 = pneg %p121
        %s228 = sand.u32 %s111, 1
        %s229 = scalar_lea.sflag [#allocation4], %s228
        %s230 = sand.u32 %s111, 1
        %s231 = smul.addr %s230, 2
        %s232 = scalar_lea.vmem [#allocation7], %s231
        %s233 = sadd.s32 %s28, %s29
        %s234 = smul.u32 2, %s233
        %s235 = sadd.s32 %s28, %s29
        %s236 = smul.u32 2, %s235
        %p237 = scmp.eq.s32.totalorder %s29, 0
        // Predicated region
        $region37: #{tpu_custom_call.1} parent=27 // pred_check
          %p238 = pneg %p237
        $region38: #{tpu_custom_call.1} parent=27 // pred_check_branch
          %240 = sbr.rel (%p238) target = $region40
        $region39: #{tpu_custom_call.1} parent=27 // pred_region
          %v241 = vlaneseq
          %vm242 = vcmp.ge.s32.totalorder %v241, 0
          %vm243 = vcmp.lt.s32.totalorder %v241, 256
          %vm244 = vmand %vm242, %vm243
          %245 = vst.msk [vmem:[%s232] sm:$0x3] %vm244, 0.0
        $region40: #{tpu_custom_call.1} parent=27 // pred_fallthru
          _
        %v246 = vld [vmem:[%s198] sm:$0xff]
        %v247 = vld [vmem:[%s207] sm:$0x3]
        %v249 = vcombine.high %v246, %v246
        %vm251 = vcmask 1043456
        %v252 = vsel %vm251, %v246, -inf
        %v253 = vrot.slane %v252, 4
        %v254 = vmax.f32 %v252, %v253
        %v255 = vrot.slane %v254, 2
        %v256 = vmax.f32 %v254, %v255
        %v257 = vrot.slane %v256, 1
        %v258 = vmax.f32 %v256, %v257
        %v259 = vsel %vm251, %v249, -inf
        %v260 = vrot.slane %v259, 4
        %v261 = vmax.f32 %v259, %v260
        %v262 = vrot.slane %v261, 2
        %v263 = vmax.f32 %v261, %v262
        %v264 = vrot.slane %v263, 1
        %v265 = vmax.f32 %v263, %v264
        %v268 = vcombine.low %v258, %v265
        %v270 = vsub.f32 %v246, %v268
        %v271 = vmul.f32 %v270, 1.442695
        %v272 = vpow.pop %v271
        %v274 = vcombine.high %v272, %v272
        %v276 = vsel %vm251, %v272, 0.0
        %v277 = vrot.slane %v276, 4
        %v278 = vadd.f32 %v276, %v277
        %v279 = vrot.slane %v278, 2
        %v280 = vadd.f32 %v278, %v279
        %v281 = vrot.slane %v280, 1
        %v282 = vadd.f32 %v280, %v281
        %v283 = vsel %vm251, %v274, 0.0
        %v284 = vrot.slane %v283, 4
        %v285 = vadd.f32 %v283, %v284
        %v286 = vrot.slane %v285, 2
        %v287 = vadd.f32 %v285, %v286
        %v288 = vrot.slane %v287, 1
        %v289 = vadd.f32 %v287, %v288
        %v290 = vlog2.pop %v282
        %v291 = vmul.f32 %v290, 0.6931472
        %v292 = vlog2.pop %v289
        %v293 = vmul.f32 %v292, 0.6931472
        %v294 = vadd.f32 %v258, %v291
        %v295 = vadd.f32 %v265, %v293
        %v296 = vlaneseq
        %v297 = vshrl.u32 %v296, 7
        %v298 = vlaneseq
        %v299 = vshrl.u32 %v298, 7
        %v300 = vsub.s32 0, %v299
        %v301 = vrot.slane %v247, %v300
        %v302 = vlaneseq
        %v303 = vshrl.u32 %v302, 7
        %v304 = vsub.s32 1, %v303
        %v305 = vrot.slane %v247, %v304
        %vm306 = vcmp.eq.s32.totalorder %v297, %v301
        %vm307 = vcmp.eq.s32.totalorder %v297, %v305
        %v308 = vsel %vm306, %v246, 0.0
        %v309 = vsel %vm307, %v249, 0.0
        %v310 = vsel %vm251, %v308, 0.0
        %v311 = vrot.slane %v310, 4
        %v312 = vadd.f32 %v310, %v311
        %v313 = vrot.slane %v312, 2
        %v314 = vadd.f32 %v312, %v313
        %v315 = vrot.slane %v314, 1
        %v316 = vadd.f32 %v314, %v315
        %v317 = vsel %vm251, %v309, 0.0
        %v318 = vrot.slane %v317, 4
        %v319 = vadd.f32 %v317, %v318
        %v320 = vrot.slane %v319, 2
        %v321 = vadd.f32 %v319, %v320
        %v322 = vrot.slane %v321, 1
        %v323 = vadd.f32 %v321, %v322
        %vm324 = vcmp.ge.s32.totalorder %v247, 0
        %v325 = vsub.f32 %v294, %v316
        %v326 = vsub.f32 %v295, %v323
        %v329 = vcombine.low %v325, %v326
        %v331 = vunpack.c.l.s4 1966171168
        %v332 = vunpack.c.0.s8 %v331
        %v333 = vlaneseq
        %v334 = vshrl.u32 %v333, 7
        %v335 = vsub.s32 %v332, %v334
        %v336 = vrot.slane %v329, %v335
        %v338 = vunpack.c.l.s4 1966171168
        %v339 = vunpack.c.0.s8 %v338
        %v340 = vlaneseq
        %v341 = vshrl.u32 %v340, 7
        %v342 = vsub.s32 %v339, %v341
        %v343 = vrot.slane %v336, %v342
        %v345 = vsel %vm324, %v343, 0.0
        %v346 = vld [vmem:[%s232] sm:$0x3]
        %v347 = vadd.f32 %v346, %v345
        %v348 = vlaneseq
        %vm349 = vcmp.ge.s32.totalorder %v348, 0
        %vm350 = vcmp.lt.s32.totalorder %v348, 256
        %vm351 = vmand %vm349, %vm350
        %352 = vst.msk [vmem:[%s232] sm:$0x3] %vm351, %v347
        %s353 = sand.u32 %s111, 1
        %s354 = scalar_lea.sflag [#allocation4], %s353
        %s355 = sand.u32 %s111, 1
        %s356 = smul.addr %s355, 2
        %s357 = scalar_lea.vmem [#allocation7], %s356
        // Predicated region
        $region41: #{tpu_custom_call.1} parent=27 // pred_check
          %p358 = pneg %p121
        $region42: #{tpu_custom_call.1} parent=27 // pred_check_branch
          %360 = sbr.rel (%p358) target = $region44
        $region43: #{tpu_custom_call.1} parent=27 // pred_region
          %s362 = ssub.s32 32, 32
          %363 = vsyncadd %s354, %s362
          %s364 = smul.addr %s28, 2
          %s365 = smul.addr %s27, 2
          %s366 = sadd.s32 %s364, %s365
          %s367 = smul.addr %s366, 16
          %s368 = scalar_lea.hbm %s2, %s367
          %s370 = sshll.u32 %s357, 4
          %s371 = int_to_ptr.vmem [resolvable:$true] %s370
          %373 = dma.vmem_to_hbm [thread:$0]  %s371, 32, %s368, %s354
        $region44: #{tpu_custom_call.1} parent=27 // pred_fallthru
          _
      $region28: #{tpu_custom_call.1} parent=5 // pred_fallthru
        _
      %p374 = scmp.le.s32.totalorder 2, %s17
      // Predicated region
      $region45: #{tpu_custom_call.1} parent=5 // pred_check
        %p375 = pneg %p374
      $region46: #{tpu_custom_call.1} parent=5 // pred_check_branch
        %377 = sbr.rel (%p375) target = $region48
      $region47: #{tpu_custom_call.1} parent=5 // pred_region
        %s378 = ssub.s32 %s17, 2
        // Predicated region
        $region49: #{tpu_custom_call.1} parent=47 // pred_check
          %p379 = pneg %p127
        $region50: #{tpu_custom_call.1} parent=47 // pred_check_branch
          %381 = sbr.rel (%p379) target = $region52
        $region51: #{tpu_custom_call.1} parent=47 // pred_region
          %s382 = sand.u32 %s112, 1
          %s383 = scalar_lea.sflag [#allocation4], %s382
          %s384 = sand.u32 %s112, 1
          %s385 = smul.addr %s384, 2
          %s386 = scalar_lea.vmem [#allocation7], %s385
          %387 = dma.done %s383, 32
        $region52: #{tpu_custom_call.1} parent=47 // pred_fallthru
          _
      $region48: #{tpu_custom_call.1} parent=5 // pred_fallthru
        _
    $region6: #{tpu_custom_call.1} parent=1 // loop_footer
      %s21 = sadd.s32 1, %s17
    $region7: #{tpu_custom_call.1} parent=1 // loop_footer_branch
      %16 = sbr.rel target = $region3
    $region8: #{tpu_custom_call.1} parent=1 // loop_exit
      _
    %388 = vsyncpa [#allocation3], 1
    %s389 = scalar_lea.sflag [#allocation3], 1
    %390 = vsyncpa %s389, 1
    %391 = vsyncpa [#allocation6], 1
    %s392 = scalar_lea.sflag [#allocation6], 1
    %393 = vsyncpa %s392, 1
    %394 = vsyncpa [#allocation4], 1
    %s395 = scalar_lea.sflag [#allocation4], 1
    %396 = vsyncpa %s395, 1

</llo_original>
